<compile_context>
chip_gen: v6e
topology: v6e:2x2x1
jax: 0.10.0
libtpu: 0.0.40
codegen_flags: <defaults>
</compile_context>

<pallas_src>
import functools

import jax
import jax.numpy as jnp
from jax.experimental import pallas as pl
from jax.experimental.pallas import tpu as pltpu

_LANE = 128
_SUBLANE = 8
_NEG_INF = -1.0e10


def _categorical_kernel(x_ref, w_ref, b_ref, avail_ref, logits_ref, logp_ref):
    # Linear layer (MXU, bf16 operands, f32 accumulation) + bias (f32).
    logits = jnp.dot(x_ref[...], w_ref[...],
                     preferred_element_type=jnp.float32) + b_ref[...]
    # available_actions == 0 -> logit = -1e10 (also masks the lane padding).
    masked = jnp.where(avail_ref[...] == 0, jnp.float32(_NEG_INF), logits)
    # Categorical(logits=...) normalization with a single exp pass.
    m = jnp.max(masked, axis=-1, keepdims=True)
    z = masked - m
    p = jnp.exp(z)                                   # one EUP exp over the tile
    s = jnp.sum(p, axis=-1, keepdims=True)
    logits_ref[...] = masked
    logp_ref[...] = z - jnp.log(s)


def _round_up(v, m):
    return ((v + m - 1) // m) * m


@functools.partial(jax.jit, static_argnames=("block_b",))
def categorical_forward(x, w, b, available_actions, *, block_b=512):
    """Returns (masked_logits, normalized_log_probs, probs) of the Categorical dist.

    x: [B, K] float, w: [K, N] (torch weight transposed), b: [N], available_actions: [B, N] 0/1.
    """
    B, K = x.shape
    N = w.shape[1]

    # Lane-dense output width and batch tiling.
    n_pad = _round_up(max(N, _LANE), _LANE)
    tb = min(block_b, _round_up(B, _SUBLANE))
    tb = _round_up(tb, _SUBLANE)
    b_pad = _round_up(B, tb)
    grid_b = b_pad // tb

    # Pad inputs. Padded action lanes get avail=0 -> -1e10 -> contribute 0 to softmax.
    x_p = jnp.zeros((b_pad, K), jnp.bfloat16).at[:B].set(x.astype(jnp.bfloat16))
    w_p = jnp.zeros((K, n_pad), jnp.bfloat16).at[:, :N].set(w.astype(jnp.bfloat16))
    bias_p = jnp.zeros((1, n_pad), jnp.float32).at[0, :N].set(b.astype(jnp.float32))
    avail_p = jnp.zeros((b_pad, n_pad), jnp.int32).at[:B, :N].set(
        available_actions.astype(jnp.int32))

    grid_spec = pltpu.PrefetchScalarGridSpec(
        num_scalar_prefetch=0,
        grid=(grid_b,),
        in_specs=[
            pl.BlockSpec((tb, K), lambda i: (i, 0)),        # x tile
            pl.BlockSpec((K, n_pad), lambda i: (0, 0)),     # W resident
            pl.BlockSpec((1, n_pad), lambda i: (0, 0)),     # bias resident
            pl.BlockSpec((tb, n_pad), lambda i: (i, 0)),    # avail tile
        ],
        out_specs=(
            pl.BlockSpec((tb, n_pad), lambda i: (i, 0)),    # masked logits
            pl.BlockSpec((tb, n_pad), lambda i: (i, 0)),    # log-probs
        ),
    )
    out_shapes = (
        jax.ShapeDtypeStruct((b_pad, n_pad), jnp.float32),
        jax.ShapeDtypeStruct((b_pad, n_pad), jnp.float32),
    )

    logits_p, logp_p = pl.pallas_call(
        _categorical_kernel,
        out_shape=out_shapes,
        grid_spec=grid_spec,
        compiler_params=pltpu.CompilerParams(
            dimension_semantics=("parallel",)),
    )(x_p, w_p, bias_p, avail_p)

    logits = logits_p[:B, :N]
    logp = logp_p[:B, :N]
    probs = jnp.exp(logp)            # lazy, like torch Categorical.probs
    return logits, logp, probs


def orthogonal_linear_params(key, num_inputs, num_outputs, gain=0.01):
    """Torch-style orthogonal_ init (scaled by gain), zero bias.

    torch weight shape is [num_outputs, num_inputs]; returned transposed as
    [num_inputs, num_outputs] for the x @ W kernel layout.
    """
    rows, cols = num_outputs, num_inputs
    a = jax.random.normal(key, (max(rows, cols), min(rows, cols)), dtype=jnp.float32)
    q, r = jnp.linalg.qr(a)
    q = q * jnp.sign(jnp.diag(r))
    if rows < cols:
        q = q.T
    w_torch = gain * q[:rows, :cols]        # [num_outputs, num_inputs]
    b = jnp.zeros((num_outputs,), dtype=jnp.float32)
    return w_torch.T, b                     # [num_inputs, num_outputs], [num_outputs]


def _reference(x, w, b, avail):
    # Same math as torch Categorical, with matmul inputs rounded to bf16 like the kernel.
    xr = x.astype(jnp.bfloat16).astype(jnp.float32)
    wr = w.astype(jnp.bfloat16).astype(jnp.float32)
    logits = xr @ wr + b[None, :]
    logits = jnp.where(avail == 0, _NEG_INF, logits)
    logp = logits - jax.scipy.special.logsumexp(logits, axis=-1, keepdims=True)
    return logits, logp, jnp.exp(logp)


def _check(batch, num_inputs, num_outputs, key):
    k_x, k_w, k_a = jax.random.split(key, 3)
    x = jax.random.normal(k_x, (batch, num_inputs), dtype=jnp.float32)
    w, b = orthogonal_linear_params(k_w, num_inputs, num_outputs, gain=0.01)
    avail = (jax.random.uniform(k_a, (batch, num_outputs)) > 0.3).astype(jnp.int32)
    avail = avail.at[:, 0].set(1)           # guarantee >=1 available action per row

    logits, logp, probs = categorical_forward(x, w, b, avail)
    jax.block_until_ready((logits, logp, probs))

    ref_logits, ref_logp, ref_probs = _reference(x, w, b, avail)
    assert jnp.allclose(logits, ref_logits, atol=1e-4, rtol=1e-4)
    assert jnp.allclose(logp, ref_logp, atol=1e-4, rtol=1e-4)
    assert jnp.allclose(probs, ref_probs, atol=1e-5, rtol=1e-4)


if __name__ == "__main__":
    key = jax.random.PRNGKey(0)
    k1, k2 = jax.random.split(key)

    # Small shape matching the module (policy head: num_inputs=32 -> num_outputs=16).
    _check(batch=8, num_inputs=32, num_outputs=16, key=k1)
    # Larger ragged batch to exercise the batch grid + padding path.
    _check(batch=1000, num_inputs=32, num_outputs=16, key=k2)

    print("KERNEL_OK")
</pallas_src>

<mosaic_0001>
module attributes {stable_mosaic.version = 11 : i64} {
  func.func @_categorical_kernel(%arg0: i32, %arg1: memref<8x32xbf16, #tpu.memory_space<vmem>>, %arg2: memref<32x128xbf16, #tpu.memory_space<vmem>>, %arg3: memref<1x128xf32, #tpu.memory_space<vmem>>, %arg4: memref<8x128xi32, #tpu.memory_space<vmem>>, %arg5: memref<8x128xf32, #tpu.memory_space<vmem>>, %arg6: memref<8x128xf32, #tpu.memory_space<vmem>>) attributes {dimension_semantics = [#tpu.dimension_semantics<parallel>], iteration_bounds = array<i64: 1>, scalar_prefetch = 0 : i64, scratch_operands = 0 : i64, tpu.core_type = #tpu.core_type<tc>, window_params = [{transform_indices = @transform_0, window_bounds = array<i64: 8, 32>}, {pipeline_mode = #tpu.pipeline_mode<synchronous>, transform_indices = @transform_1, window_bounds = array<i64: 32, 128>}, {pipeline_mode = #tpu.pipeline_mode<synchronous>, transform_indices = @transform_2, window_bounds = array<i64: 1, 128>}, {transform_indices = @transform_3, window_bounds = array<i64: 8, 128>}, {transform_indices = @transform_4, window_bounds = array<i64: 8, 128>}, {transform_indices = @transform_5, window_bounds = array<i64: 8, 128>}]} {
    %c0 = arith.constant 0 : index
    %c0_0 = arith.constant 0 : index
    %0 = vector.load %arg1[%c0, %c0_0] : memref<8x32xbf16, #tpu.memory_space<vmem>>, vector<8x32xbf16>
    %c0_1 = arith.constant 0 : index
    %c0_2 = arith.constant 0 : index
    %1 = vector.load %arg2[%c0_1, %c0_2] : memref<32x128xbf16, #tpu.memory_space<vmem>>, vector<32x128xbf16>
    %cst = arith.constant dense<0.000000e+00> : vector<8x128xf32>
    %2 = tpu.matmul %0, %1, %cst {dimension_numbers = #tpu.dot_dimension_numbers<[1], [0], [0], [1], [0, 0, 1, 1], [], []>} : vector<8x32xbf16>, vector<32x128xbf16>, vector<8x128xf32> -> vector<8x128xf32>
    %c0_3 = arith.constant 0 : index
    %c0_4 = arith.constant 0 : index
    %3 = vector.load %arg3[%c0_3, %c0_4] : memref<1x128xf32, #tpu.memory_space<vmem>>, vector<1x128xf32>
    %4 = vector.broadcast %3 : vector<1x128xf32> to vector<8x128xf32>
    %5 = arith.addf %2, %4 : vector<8x128xf32>
    %c0_5 = arith.constant 0 : index
    %c0_6 = arith.constant 0 : index
    %6 = vector.load %arg4[%c0_5, %c0_6] : memref<8x128xi32, #tpu.memory_space<vmem>>, vector<8x128xi32>
    %c0_i32 = arith.constant 0 : i32
    %7 = vector.broadcast %c0_i32 : i32 to vector<8x128xi32>
    %8 = arith.cmpi eq, %6, %7 : vector<8x128xi32>
    %cst_7 = arith.constant -1.000000e+10 : f32
    %9 = vector.broadcast %cst_7 : f32 to vector<8x128xf32>
    %10 = arith.select %8, %9, %5 : vector<8x128xi1>, vector<8x128xf32>
    %cst_8 = arith.constant dense<0xFF800000> : vector<8xf32>
    %11 = vector.multi_reduction <maximumf>, %10, %cst_8 [1] : vector<8x128xf32> to vector<8xf32>
    %12 = vector.shape_cast %11 : vector<8xf32> to vector<8x1xf32>
    %13 = vector.broadcast %12 : vector<8x1xf32> to vector<8x128xf32>
    %14 = arith.subf %10, %13 : vector<8x128xf32>
    %15 = math.exp %14 : vector<8x128xf32>
    %cst_9 = arith.constant dense<0.000000e+00> : vector<8xf32>
    %16 = vector.multi_reduction <add>, %15, %cst_9 [1] : vector<8x128xf32> to vector<8xf32>
    %17 = vector.shape_cast %16 : vector<8xf32> to vector<8x1xf32>
    %c0_10 = arith.constant 0 : index
    %c0_11 = arith.constant 0 : index
    %18 = vector.load %arg5[%c0_10, %c0_11] : memref<8x128xf32, #tpu.memory_space<vmem>>, vector<8x128xf32>
    tpu.vector_store %arg5[%c0_10, %c0_11], %10 {strides = array<i32>} : memref<8x128xf32, #tpu.memory_space<vmem>>, vector<8x128xf32>,
    %19 = math.log %17 : vector<8x1xf32>
    %20 = vector.broadcast %19 : vector<8x1xf32> to vector<8x128xf32>
    %21 = arith.subf %14, %20 : vector<8x128xf32>
    %c0_12 = arith.constant 0 : index
    %c0_13 = arith.constant 0 : index
    %22 = vector.load %arg6[%c0_12, %c0_13] : memref<8x128xf32, #tpu.memory_space<vmem>>, vector<8x128xf32>
    tpu.vector_store %arg6[%c0_12, %c0_13], %21 {strides = array<i32>} : memref<8x128xf32, #tpu.memory_space<vmem>>, vector<8x128xf32>,
    return
  }
  func.func @transform_0(%arg0: i32) -> (i32, i32) {
    %c0_i32 = arith.constant 0 : i32
    %c0_i32_0 = arith.constant 0 : i32
    return %arg0, %c0_i32 : i32, i32
  }
  func.func @transform_1(%arg0: i32) -> (i32, i32) {
    %c0_i32 = arith.constant 0 : i32
    %c0_i32_0 = arith.constant 0 : i32
    %c0_i32_1 = arith.constant 0 : i32
    return %c0_i32, %c0_i32_0 : i32, i32
  }
  func.func @transform_2(%arg0: i32) -> (i32, i32) {
    %c0_i32 = arith.constant 0 : i32
    %c0_i32_0 = arith.constant 0 : i32
    %c0_i32_1 = arith.constant 0 : i32
    return %c0_i32, %c0_i32_0 : i32, i32
  }
  func.func @transform_3(%arg0: i32) -> (i32, i32) {
    %c0_i32 = arith.constant 0 : i32
    %c0_i32_0 = arith.constant 0 : i32
    return %arg0, %c0_i32 : i32, i32
  }
  func.func @transform_4(%arg0: i32) -> (i32, i32) {
    %c0_i32 = arith.constant 0 : i32
    %c0_i32_0 = arith.constant 0 : i32
    return %arg0, %c0_i32 : i32, i32
  }
  func.func @transform_5(%arg0: i32) -> (i32, i32) {
    %c0_i32 = arith.constant 0 : i32
    %c0_i32_0 = arith.constant 0 : i32
    return %arg0, %c0_i32 : i32, i32
  }
}

</mosaic_0001>

<llo_original>
// kernel: categorical_forward.1
$region0: #{categorical_forward.1}
  #allocation0 [shape = 'u32[]', space=smem, size = 0x4, offset = 0x4, fixed_abs, tag = 'smem constant byte address 0x4 - core index']
  #allocation1 [shape = 'u32[144,128]{1,0:T(1,128)}', space=vmem, size = 0x12000, scoped, tag = 'internal scratch']
  %s0 = inlined_call_operand.vmem [shape: bf16[8,32], index: 0, kind: input, shape index: {}]
  %s1 = inlined_call_operand.vmem [shape: bf16[32,128], index: 1, kind: input, shape index: {}]
  %s2 = inlined_call_operand.vmem [shape: f32[1,128], index: 2, kind: input, shape index: {}]
  %s3 = inlined_call_operand.vmem [shape: s32[8,128], index: 3, kind: input, shape index: {}]
  %s4 = inlined_call_operand.hbm [shape: f32[8,128], index: 4, kind: output, shape index: {0}]
  %s5 = inlined_call_operand.vmem [shape: f32[8,128], index: 5, kind: output, shape index: {1}]
  %6 = xla_tuple %s4, %s5
  %s7 = sld [smem:[#allocation0]]
  $region34: #{categorical_forward.1} parent=0
    _
  %s9 = ssub.s32 1, %s7
  %s10 = scalar_select 0, %s9, %s7
  $region1: #{categorical_forward.1} parent=0
    #allocation2 [shape = 'u8[4096]{0}', space=vmem, size = 0x1000, scoped, tag = 'output window, operand 0, single buffered']
    #allocation3 [shape = 's32[1]{0}', space=sflag, size = 0x4, scoped, tag = 'scoped memory for categorical_forward.1']
    %11 = vsyncpa [#allocation3], 0
    // Predicated region
    $region2: #{categorical_forward.1} parent=1 // pred_check
      _
    $region3: #{categorical_forward.1} parent=1 // pred_check_branch
      %13 = sbr.rel (0) target = $region5
    $region4: #{categorical_forward.1} parent=1 // pred_region
      _
    $region5: #{categorical_forward.1} parent=1 // pred_fallthru
      _
    // Predicated region
    $region6: #{categorical_forward.1} parent=1 // pred_check
      _
    $region7: #{categorical_forward.1} parent=1 // pred_check_branch
      %15 = sbr.rel (0) target = $region9
    $region8: #{categorical_forward.1} parent=1 // pred_region
      _
    $region9: #{categorical_forward.1} parent=1 // pred_fallthru
      _
    // Predicated region
    $region10: #{categorical_forward.1} parent=1 // pred_check
      _
    $region11: #{categorical_forward.1} parent=1 // pred_check_branch
      %17 = sbr.rel (0) target = $region13
    $region12: #{categorical_forward.1} parent=1 // pred_region
      _
    $region13: #{categorical_forward.1} parent=1 // pred_fallthru
      _
    // Predicated region
    $region14: #{categorical_forward.1} parent=1 // pred_check
      _
    $region15: #{categorical_forward.1} parent=1 // pred_check_branch
      %19 = sbr.rel (0) target = $region17
    $region16: #{categorical_forward.1} parent=1 // pred_region
      _
    $region17: #{categorical_forward.1} parent=1 // pred_fallthru
      _
    %v21 = vld [vmem:[%s0] sm:$0xf]
    %v22 = vld [vmem:[%s1] sm:$0xf]
    %v23 = vld [vmem:[%s1 + $0x4] sm:$0xf]
    %v24 = vld [vmem:[%s1 + $0x8] sm:$0xf]
    %v25 = vld [vmem:[%s1 + $0xc] sm:$0xf]
    %v26 = vld [vmem:[%s2] sm:$0x1]
    %v28 = vlaneseq
    %v29 = vshrl.u32 %v28, 7
    %v30 = vsub.s32 0, %v29
    %v31 = vrot.slane %v26, %v30
    %v37 = vunpack.c.l.b16 %v22
    %v38 = vunpack.c.l.b16 %v23
    %v39 = vunpack.c.l.b16 %v24
    %v40 = vunpack.c.l.b16 %v25
    %v41 = vpack.c.b16 %v38, %v37
    %v42 = vpack.c.b16 %v40, %v39
    %vm45 = vcmask 261120
    %v47 = vsel %vm45, %v21, 0
    %49 = vmatprep.subr.bf16.mxu0 0
    %50 = vmatpush1.bf16.msra.mxu0 0
    %51 = vmatprep.subr.bf16.mxu0 0
    %52 = vmatpush1.bf16.msra.mxu0 0
    %53 = vmatprep.subr.bf16.mxu0 0
    %54 = vmatpush1.bf16.msra.mxu0 0
    %55 = vmatprep.subr.bf16.mxu0 0
    %56 = vmatpush1.bf16.msra.mxu0 0
    %57 = vmatprep.subr.bf16.mxu0 0
    %58 = vmatpush1.bf16.msra.mxu0 0
    %59 = vmatprep.subr.bf16.mxu0 0
    %60 = vmatpush1.bf16.msra.mxu0 0
    %61 = vmatprep.subr.bf16.mxu0 0
    %62 = vmatpush1.bf16.msra.mxu0 %v42
    %63 = vmatprep.subr.bf16.mxu0 0
    %64 = vmatpush1.bf16.msra.mxu0 %v41
    %65 = vmatprep.subr.bf16.mxu0 0
    %66 = vmatpush2.bf16.msra.mxu0 0
    %67 = vmatprep.subr.bf16.mxu0 0
    %68 = vmatpush2.bf16.msra.mxu0 0
    %69 = vmatprep.subr.bf16.mxu0 0
    %70 = vmatpush2.bf16.msra.mxu0 0
    %71 = vmatprep.subr.bf16.mxu0 0
    %72 = vmatpush2.bf16.msra.mxu0 0
    %73 = vmatprep.subr.bf16.mxu0 0
    %74 = vmatpush2.bf16.msra.mxu0 0
    %75 = vmatprep.subr.bf16.mxu0 0
    %76 = vmatpush2.bf16.msra.mxu0 0
    %77 = vmatprep.subr.bf16.mxu0 0
    %78 = vmatpush2.bf16.msra.mxu0 0
    %79 = vmatprep.subr.bf16.mxu0 0
    %80 = vmatpush2.bf16.msra.mxu0 0
    %81 = vmatprep.mubr.bf16.mxu0 0
    %82 = vmatmul.mubr.bf16.gmra.mxu0 %v47
    %v83 = vpop.f32.mrf.mxu0
    %v84 = vadd.f32 %v31, %v83
    %v85 = vpop.f32.mrf.mxu0
    %v86 = vpop.f32.mrf.mxu0
    %v87 = vpop.f32.mrf.mxu0
    %88 = vdwg.mxu0
    %v89 = vld [vmem:[%s3] sm:$0xff]
    %vm90 = vcmp.eq.s32.totalorder %v89, 0
    %v91 = vsel %vm90, -1e+10, %v84
    %92 = vmax.xlane.f32.xlu0 %v91
    %v93 = vpop.xlane.xlu0 %92
    %v94 = vsub.f32 %v91, %v93
    %v95 = vmul.f32 %v94, 1.442695
    %v96 = vpow.pop %v95
    %97 = vadd.xlane.f32.xlu0 %v96
    %v98 = vpop.xlane.xlu0 %97
    %99 = vst [vmem:[#allocation2] sm:$0xff] %v91
    %v100 = vlog2.pop %v98
    %v101 = vmul.f32 %v100, 0.6931472
    %v102 = vsub.f32 %v94, %v101
    %103 = vst [vmem:[%s5] sm:$0xff] %v102
    // Predicated region
    $region18: #{categorical_forward.1} parent=1 // pred_check
      _
    $region19: #{categorical_forward.1} parent=1 // pred_check_branch
      %105 = sbr.rel (0) target = $region21
    $region20: #{categorical_forward.1} parent=1 // pred_region
      %s107 = ssub.s32 128, 128
      %108 = vsyncadd [#allocation3], %s107
      %s110 = sshll.u32 [#allocation2], 4
      %s111 = int_to_ptr.vmem [resolvable:$true] %s110
      %113 = dma.vmem_to_hbm [thread:$0]  %s111, 128, %s4, [#allocation3]
    $region21: #{categorical_forward.1} parent=1 // pred_fallthru
      _
    // Predicated region
    $region22: #{categorical_forward.1} parent=1 // pred_check
      _
    $region23: #{categorical_forward.1} parent=1 // pred_check_branch
      %115 = sbr.rel (0) target = $region25
    $region24: #{categorical_forward.1} parent=1 // pred_region
      _
    $region25: #{categorical_forward.1} parent=1 // pred_fallthru
      _
    // Predicated region
    $region26: #{categorical_forward.1} parent=1 // pred_check
      _
    $region27: #{categorical_forward.1} parent=1 // pred_check_branch
      %117 = sbr.rel (0) target = $region29
    $region28: #{categorical_forward.1} parent=1 // pred_region
      %118 = dma.done [#allocation3], 128
    $region29: #{categorical_forward.1} parent=1 // pred_fallthru
      _
    // Predicated region
    $region30: #{categorical_forward.1} parent=1 // pred_check
      _
    $region31: #{categorical_forward.1} parent=1 // pred_check_branch
      %120 = sbr.rel (0) target = $region33
    $region32: #{categorical_forward.1} parent=1 // pred_region
      _
    $region33: #{categorical_forward.1} parent=1 // pred_fallthru
      _
    %121 = vsyncpa [#allocation3], 1

</llo_original>
